<compile_context>
chip_gen: v7x
topology: tpu7x:2x2x1
jax: 0.10.0
libtpu: 0.0.40
codegen_flags: <defaults>
</compile_context>

<pallas_src>
import functools
import math

import jax
import jax.numpy as jnp
from jax.experimental import pallas as pl
from jax.experimental.pallas import tpu as pltpu


# ----------------------------------------------------------------------------
# pe table construction (buffer setup -> plain JAX, deterministic)
# ----------------------------------------------------------------------------
def make_pe_table(d_model: int, max_len: int) -> jax.Array:
    position = jnp.arange(max_len, dtype=jnp.float32)[:, None]          # [L, 1]
    div_term = jnp.exp(
        jnp.arange(0, d_model, 2, dtype=jnp.float32)
        * (-math.log(10000.0) / d_model)
    )                                                                    # [D/2]
    pe = jnp.zeros((max_len, d_model), dtype=jnp.float32)
    pe = pe.at[:, 0::2].set(jnp.sin(position * div_term))
    pe = pe.at[:, 1::2].set(jnp.cos(position * div_term))
    return pe                                                            # [L, D]


# ----------------------------------------------------------------------------
# Pallas kernels
# ----------------------------------------------------------------------------
def _pe_add_kernel(x_ref, pe_ref, o_ref):
    # x_ref: (TS, BD) tile; pe_ref: (1, BD) resident row; broadcast over sublanes.
    o_ref[...] = x_ref[...] + pe_ref[...]


def _pe_add_dropout_kernel(x_ref, pe_ref, u_ref, o_ref, *, keep_prob):
    # Inverted dropout: keep with prob keep_prob, scale kept values by 1/keep_prob.
    y = x_ref[...] + pe_ref[...]
    keep = u_ref[...] < jnp.float32(keep_prob)
    o_ref[...] = jnp.where(keep, y * (1.0 / keep_prob), 0.0).astype(o_ref.dtype)


# ----------------------------------------------------------------------------
# Wrapper
# ----------------------------------------------------------------------------
def _choose_tile_rows(S: int, BD: int, itemsize: int,
                      target_bytes: int = 2 << 20) -> int:
    """Rows of the flattened (S, BD) array per grid step: ~target_bytes per
    x tile, multiple of 8 (sublane constraint), capped at S."""
    rows = max(1, target_bytes // (BD * itemsize))
    if rows >= S:
        return S                       # one tile covers the whole array
    return max(8, (rows // 8) * 8)


def positional_encoding(x: jax.Array,
                        pe: jax.Array,
                        *,
                        dropout_p: float = 0.1,
                        training: bool = False,
                        key: jax.Array | None = None) -> jax.Array:
    """x: [S, B, D]; pe: [max_len, D].  Returns [S, B, D]."""
    S, B, D = x.shape
    BD = B * D
    # Mirror the PyTorch module exactly: pe[:, :x.shape[1]] -> slice by batch.
    pe_row = pe[:B, :].reshape(1, BD).astype(x.dtype)        # [1, B*D]
    x_flat = x.reshape(S, BD)                                # lane-dense layout

    ts = _choose_tile_rows(S, BD, x.dtype.itemsize)
    grid = (pl.cdiv(S, ts),)

    x_spec = pl.BlockSpec((ts, BD), lambda i: (i, 0))
    pe_spec = pl.BlockSpec((1, BD), lambda i: (0, 0))        # constant -> resident
    o_spec = pl.BlockSpec((ts, BD), lambda i: (i, 0))
    out_shape = jax.ShapeDtypeStruct((S, BD), x.dtype)

    cparams = pltpu.CompilerParams(
        dimension_semantics=("parallel",),                   # megacore-shardable
        vmem_limit_bytes=32 * 1024 * 1024,                   # > v5e 16 MiB default,
    )                                                        # <= v7x 64 MiB physical

    if not training or dropout_p == 0.0:
        out_flat = pl.pallas_call(
            _pe_add_kernel,
            out_shape=out_shape,
            grid_spec=pltpu.PrefetchScalarGridSpec(
                num_scalar_prefetch=0,
                grid=grid,
                in_specs=[x_spec, pe_spec],
                out_specs=o_spec,
            ),
            compiler_params=cparams,
        )(x_flat, pe_row)
        return out_flat.reshape(S, B, D)

    keep_prob = 1.0 - float(dropout_p)
    if key is None:
        key = jax.random.PRNGKey(0)
    # TODO(synk): the dropout mask comes from jax.random, so it cannot bit-match
    # torch's RNG stream; semantics (Bernoulli(1-p) mask, 1/(1-p) scaling) match.
    u = jax.random.uniform(key, (S, BD), dtype=jnp.float32)

    kernel = functools.partial(_pe_add_dropout_kernel, keep_prob=keep_prob)
    out_flat = pl.pallas_call(
        kernel,
        out_shape=out_shape,
        grid_spec=pltpu.PrefetchScalarGridSpec(
            num_scalar_prefetch=0,
            grid=grid,
            in_specs=[x_spec, pe_spec, x_spec],              # u tiled like x
            out_specs=o_spec,
        ),
        compiler_params=cparams,
    )(x_flat, pe_row, u)
    return out_flat.reshape(S, B, D)


# ----------------------------------------------------------------------------
# Demo / self-check
# ----------------------------------------------------------------------------
if __name__ == "__main__":
    d_model = 32
    max_len = 64
    seq_len = 8
    batch = 4

    root = jax.random.PRNGKey(0)
    kx, kd = jax.random.split(root)
    x = jax.random.normal(kx, (seq_len, batch, d_model), dtype=jnp.float32)
    pe = make_pe_table(d_model, max_len)

    # Eval mode (dropout is identity).
    out = positional_encoding(x, pe, dropout_p=0.1, training=False)
    out = jax.block_until_ready(out)

    # Reference (pure JAX) — reproduces the PyTorch batch-axis broadcast exactly.
    ref = x + pe[None, :batch, :]
    assert out.shape == x.shape and out.dtype == x.dtype
    assert jnp.allclose(out, ref, atol=1e-6, rtol=1e-6)

    # Training mode: in-kernel inverted dropout with a streamed-in mask.
    keep_prob = 0.9
    out_tr = positional_encoding(x, pe, dropout_p=0.1, training=True, key=kd)
    out_tr = jax.block_until_ready(out_tr)
    assert out_tr.shape == x.shape and out_tr.dtype == x.dtype
    # Every element is either exactly dropped (0) or the kept value scaled.
    is_zero = jnp.isclose(out_tr, 0.0)
    is_scaled = jnp.isclose(out_tr, ref / keep_prob, atol=1e-5, rtol=1e-5)
    assert bool(jnp.all(is_zero | is_scaled))

    print("KERNEL_OK")
</pallas_src>

<mosaic_0001>
module attributes {stable_mosaic.version = 11 : i64} {
  func.func @_pe_add_kernel(%arg0: i32, %arg1: memref<8x128xf32, #tpu.memory_space<vmem>>, %arg2: memref<1x128xf32, #tpu.memory_space<vmem>>, %arg3: memref<8x128xf32, #tpu.memory_space<vmem>>) attributes {dimension_semantics = [#tpu.dimension_semantics<parallel>], iteration_bounds = array<i64: 1>, scalar_prefetch = 0 : i64, scratch_operands = 0 : i64, tpu.core_type = #tpu.core_type<tc>, window_params = [{transform_indices = @transform_0, window_bounds = array<i64: 8, 128>}, {pipeline_mode = #tpu.pipeline_mode<synchronous>, transform_indices = @transform_1, window_bounds = array<i64: 1, 128>}, {transform_indices = @transform_2, window_bounds = array<i64: 8, 128>}]} {
    %c0 = arith.constant 0 : index
    %c0_0 = arith.constant 0 : index
    %0 = vector.load %arg1[%c0, %c0_0] : memref<8x128xf32, #tpu.memory_space<vmem>>, vector<8x128xf32>
    %c0_1 = arith.constant 0 : index
    %c0_2 = arith.constant 0 : index
    %1 = vector.load %arg2[%c0_1, %c0_2] : memref<1x128xf32, #tpu.memory_space<vmem>>, vector<1x128xf32>
    %2 = vector.broadcast %1 : vector<1x128xf32> to vector<8x128xf32>
    %3 = arith.addf %0, %2 : vector<8x128xf32>
    %c0_3 = arith.constant 0 : index
    %c0_4 = arith.constant 0 : index
    %4 = vector.load %arg3[%c0_3, %c0_4] : memref<8x128xf32, #tpu.memory_space<vmem>>, vector<8x128xf32>
    tpu.vector_store %arg3[%c0_3, %c0_4], %3 {strides = array<i32>} : memref<8x128xf32, #tpu.memory_space<vmem>>, vector<8x128xf32>,
    return
  }
  func.func @transform_0(%arg0: i32) -> (i32, i32) {
    %c0_i32 = arith.constant 0 : i32
    %c0_i32_0 = arith.constant 0 : i32
    return %arg0, %c0_i32 : i32, i32
  }
  func.func @transform_1(%arg0: i32) -> (i32, i32) {
    %c0_i32 = arith.constant 0 : i32
    %c0_i32_0 = arith.constant 0 : i32
    %c0_i32_1 = arith.constant 0 : i32
    return %c0_i32, %c0_i32_0 : i32, i32
  }
  func.func @transform_2(%arg0: i32) -> (i32, i32) {
    %c0_i32 = arith.constant 0 : i32
    %c0_i32_0 = arith.constant 0 : i32
    return %arg0, %c0_i32 : i32, i32
  }
}

</mosaic_0001>

<llo_original>
// kernel: tpu_custom_call.1
$region0: #{tpu_custom_call.1}
  #allocation0 [shape = 'u32[]', space=smem, size = 0x4, offset = 0x4, fixed_abs, tag = 'smem constant byte address 0x4 - core index']
  #allocation1 [shape = 'u32[144,128]{1,0:T(1,128)}', space=vmem, size = 0x12000, scoped, tag = 'internal scratch']
  %s0 = inlined_call_operand.hbm [shape: f32[8,128], index: 0, kind: input, shape index: {}]
  %s1 = inlined_call_operand.vmem [shape: f32[1,128], index: 1, kind: input, shape index: {}]
  %s2 = inlined_call_operand.hbm [shape: f32[8,128], index: 2, kind: output, shape index: {}]
  %s3 = sld [smem:[#allocation0]]
  $region22: #{tpu_custom_call.1} parent=0
    _
  %s5 = ssub.s32 1, %s3
  %s6 = scalar_select 0, %s5, %s3
  $region1: #{tpu_custom_call.1} parent=0
    #allocation2 [shape = 'u8[4096]{0}', space=vmem, size = 0x1000, scoped, tag = 'input window, operand 0, single buffered']
    #allocation3 [shape = 's32[1]{0}', space=sflag, size = 0x4, scoped, tag = 'scoped memory for tpu_custom_call.1']
    #allocation4 [shape = 's32[1]{0}', space=sflag, size = 0x4, scoped, tag = 'scoped memory for tpu_custom_call.1']
    #allocation5 [shape = 'u8[4096]{0}', space=vmem, size = 0x1000, scoped, tag = 'output window, operand 0, single buffered']
    %7 = vsyncpa [#allocation3], 0
    %8 = vsyncpa [#allocation4], 0
    // Predicated region
    $region2: #{tpu_custom_call.1} parent=1 // pred_check
      _
    $region3: #{tpu_custom_call.1} parent=1 // pred_check_branch
      %10 = sbr.rel (0) target = $region5
    $region4: #{tpu_custom_call.1} parent=1 // pred_region
      %s12 = ssub.s32 128, 128
      %13 = vsyncadd [#allocation3], %s12
      %s15 = sshll.u32 [#allocation2], 4
      %s16 = int_to_ptr.vmem [resolvable:$true] %s15
      %18 = dma.hbm_to_vmem [thread:$0]  %s0, 128, %s16, [#allocation3]
    $region5: #{tpu_custom_call.1} parent=1 // pred_fallthru
      _
    // Predicated region
    $region6: #{tpu_custom_call.1} parent=1 // pred_check
      _
    $region7: #{tpu_custom_call.1} parent=1 // pred_check_branch
      %20 = sbr.rel (0) target = $region9
    $region8: #{tpu_custom_call.1} parent=1 // pred_region
      _
    $region9: #{tpu_custom_call.1} parent=1 // pred_fallthru
      _
    // Predicated region
    $region10: #{tpu_custom_call.1} parent=1 // pred_check
      _
    $region11: #{tpu_custom_call.1} parent=1 // pred_check_branch
      %22 = sbr.rel (0) target = $region13
    $region12: #{tpu_custom_call.1} parent=1 // pred_region
      %23 = dma.done [#allocation3], 128
    $region13: #{tpu_custom_call.1} parent=1 // pred_fallthru
      _
    %v24 = vld [vmem:[#allocation2] sm:$0xff]
    %v25 = vld [vmem:[%s1] sm:$0x1]
    %v27 = vlaneseq
    %v28 = vshrl.u32 %v27, 7
    %v29 = vsub.s32 0, %v28
    %v30 = vrot.slane %v25, %v29
    %v32 = vadd.f32 %v24, %v30
    %33 = vst [vmem:[#allocation5] sm:$0xff] %v32
    // Predicated region
    $region14: #{tpu_custom_call.1} parent=1 // pred_check
      _
    $region15: #{tpu_custom_call.1} parent=1 // pred_check_branch
      %35 = sbr.rel (0) target = $region17
    $region16: #{tpu_custom_call.1} parent=1 // pred_region
      %s37 = ssub.s32 128, 128
      %38 = vsyncadd [#allocation4], %s37
      %s40 = sshll.u32 [#allocation5], 4
      %s41 = int_to_ptr.vmem [resolvable:$true] %s40
      %43 = dma.vmem_to_hbm [thread:$0]  %s41, 128, %s2, [#allocation4]
    $region17: #{tpu_custom_call.1} parent=1 // pred_fallthru
      _
    // Predicated region
    $region18: #{tpu_custom_call.1} parent=1 // pred_check
      _
    $region19: #{tpu_custom_call.1} parent=1 // pred_check_branch
      %45 = sbr.rel (0) target = $region21
    $region20: #{tpu_custom_call.1} parent=1 // pred_region
      %46 = dma.done [#allocation4], 128
    $region21: #{tpu_custom_call.1} parent=1 // pred_fallthru
      _
    %47 = vsyncpa [#allocation3], 1
    %48 = vsyncpa [#allocation4], 1

</llo_original>
